<compile_context>
chip_gen: v5e
topology: v5e:2x2
jax: 0.10.0
libtpu: 0.0.40
codegen_flags: <defaults>
</compile_context>

<pallas_src>
import math

import jax
import jax.numpy as jnp
from jax.experimental import pallas as pl
from jax.experimental.pallas import tpu as pltpu


def rte_kernel(t_ref, x_ref, tbl_ref, o_ref):
    """out = x + one_hot(t) @ table for one row tile.

    table already holds emb @ W^T + b, so the only MXU work left is the exact
    0/1 gather (f32 accumulate, single nonzero term per row -> exact row
    selection).  The add runs in f32 on the VPU, then casts to the out dtype.
    """
    t = t_ref[...]                                   # (bm, 1) int32
    bm = t.shape[0]
    max_len_p = tbl_ref.shape[0]                     # padded to a multiple of 256

    pos = jax.lax.broadcasted_iota(jnp.int32, (bm, max_len_p), 1)
    onehot = (pos == t).astype(tbl_ref.dtype)        # (bm, max_len_p), exact 0/1
    gathered = jnp.dot(onehot, tbl_ref[...],
                       preferred_element_type=jnp.float32)   # (bm, n_hid) f32

    o_ref[...] = (x_ref[...].astype(jnp.float32) + gathered).astype(o_ref.dtype)


def _vmem_capacity_bytes(default=64 * 1024 * 1024):
    try:
        info = pltpu.get_tpu_info()
        cap = getattr(info, "vmem_capacity_bytes", None)
        if cap:
            return int(cap)
    except Exception:
        pass
    return default


def _vmem_budget_and_limit():
    """Per-generation VMEM budget for the tile heuristic + matching scoped limit."""
    cap = _vmem_capacity_bytes()
    budget = max(16 * 1024 * 1024, min(48 * 1024 * 1024, cap // 2))
    limit = min(budget + 8 * 1024 * 1024, max(budget, cap - 8 * 1024 * 1024))
    return budget, limit


def _pick_block_rows(N, n_hid, max_len_p, x_itemsize, tbl_itemsize,
                     requested, vmem_budget):
    """Row-tile size: multiple of 8 (256 when possible), fits the VMEM budget."""
    lanes = ((n_hid + 127) // 128) * 128          # VMEM lane padding of last dim
    if requested is None:
        # Grid-invariant table; Mosaic double-buffers it -> count 2x (it is tiny
        # after the fuse, so Buffered(1) is not needed).
        resident = 2 * max_len_p * lanes * tbl_itemsize
        # Streamed per-row VMEM bytes, double-buffered: x in + out + t tile.
        per_row = 2 * (2 * lanes * x_itemsize + 128 * 4)
        avail = max(vmem_budget - resident, 32 * per_row)
        requested = min(2048, avail // per_row)

    if requested >= N:
        if N < 512:
            return N                   # one block == full dim (always legal)
        # Keep >=2 grid steps so dimension_semantics=("parallel",) can shard
        # across v7x's 2 TensorCores; on 1-TC v5e/v6e the extra step only costs
        # ~0.35 us.
        requested = (((N + 1) // 2 + 255) // 256) * 256

    block_rows = max(8, (requested // 8) * 8)
    if block_rows >= 256:
        block_rows = (block_rows // 256) * 256    # MXU-friendly M on v6e/v7x
    return min(block_rows, N)


def rel_temporal_encoding(x, t, emb_table, W, b, *, block_rows=None):
    """x: [N, n_hid] float, t: [N] int indices into emb_table [max_len, n_hid]."""
    N, n_hid = x.shape
    max_len = emb_table.shape[0]

    # --- one-time wrapper glue (all tiny, independent of N) -----------------
    # Fuse the Linear into the table: table = emb @ W^T + b  (f32 precompute,
    # stored in the stream dtype so bf16 streams keep a single MXU dtype path).
    table = (jnp.dot(emb_table.astype(jnp.float32),
                     jnp.asarray(W).astype(jnp.float32).T,
                     preferred_element_type=jnp.float32)
             + b.astype(jnp.float32)).astype(x.dtype)

    # Pad max_len (240 -> 256) with zero rows: clean contraction dim, rows can
    # never be selected by a valid t.
    max_len_p = ((max_len + 255) // 256) * 256
    if max_len_p != max_len:
        table = jnp.pad(table, ((0, max_len_p - max_len), (0, 0)))

    t2 = t.reshape(N, 1).astype(jnp.int32)
    # NOTE: the (block_rows, 1) int32 t tile is lane-padded 128x in VMEM; the
    # cost (~0.5 KiB/row) is accounted for in _pick_block_rows.

    vmem_budget, vmem_limit = _vmem_budget_and_limit()
    block_rows = _pick_block_rows(
        N, n_hid, max_len_p, x.dtype.itemsize, table.dtype.itemsize,
        requested=block_rows, vmem_budget=vmem_budget)

    # NOTE: when N % block_rows != 0 the tail rows compute on garbage t/x; that
    # is harmless because output writes outside N are masked — do not add any
    # in-kernel reduction over rows without accounting for this.
    grid = (pl.cdiv(N, block_rows),)

    x_is = x.dtype.itemsize
    cost = pl.CostEstimate(
        flops=int(2 * N * max_len_p * n_hid),                 # gather matmul only
        transcendentals=0,
        bytes_accessed=int(2 * N * n_hid * x_is              # x in + out
                           + N * 4                            # t
                           + max_len_p * n_hid * table.dtype.itemsize),
    )

    return pl.pallas_call(
        rte_kernel,
        out_shape=jax.ShapeDtypeStruct((N, n_hid), x.dtype),
        grid_spec=pltpu.PrefetchScalarGridSpec(
            num_scalar_prefetch=0,
            grid=grid,
            in_specs=[
                pl.BlockSpec((block_rows, 1), lambda i: (i, 0)),        # t (streamed)
                pl.BlockSpec((block_rows, n_hid), lambda i: (i, 0)),    # x (streamed)
                pl.BlockSpec((max_len_p, n_hid), lambda i: (0, 0)),     # table (resident)
            ],
            out_specs=pl.BlockSpec((block_rows, n_hid), lambda i: (i, 0)),
        ),
        compiler_params=pltpu.CompilerParams(
            dimension_semantics=("parallel",),
            vmem_limit_bytes=int(vmem_limit)),
        cost_estimate=cost,
    )(t2, x, table)


def make_params(n_hid, max_len=240, dtype=jnp.float32):
    """Deterministic parameter construction mirroring the module's __init__."""
    position = jnp.arange(0.0, max_len)[:, None]
    div_term = jnp.exp(jnp.arange(0, n_hid, 2) * -(math.log(10000.0) / n_hid))
    emb = jnp.zeros((max_len, n_hid))
    emb = emb.at[:, 0::2].set(jnp.sin(position * div_term) / math.sqrt(n_hid))
    emb = emb.at[:, 1::2].set(jnp.cos(position * div_term) / math.sqrt(n_hid))

    kW, kb = jax.random.split(jax.random.PRNGKey(42))
    bound = 1.0 / math.sqrt(n_hid)
    W = jax.random.uniform(kW, (n_hid, n_hid), minval=-bound, maxval=bound)
    b = jax.random.uniform(kb, (n_hid,), minval=-bound, maxval=bound)
    return emb.astype(dtype), W.astype(dtype), b.astype(dtype)


if __name__ == "__main__":
    # Small shapes consistent with the module's forward: x [N, n_hid], t [N].
    N, n_hid, max_len = 8, 32, 240
    emb_table, W, b = make_params(n_hid, max_len)

    key = jax.random.PRNGKey(0)
    kx, kt = jax.random.split(key)
    x = jax.random.normal(kx, (N, n_hid), dtype=jnp.float32)
    t = jax.random.randint(kt, (N,), 0, max_len, dtype=jnp.int32)

    out = jax.block_until_ready(rel_temporal_encoding(x, t, emb_table, W, b))
    ref = x + emb_table[t] @ W.T + b
    assert out.shape == (N, n_hid) and out.dtype == x.dtype
    assert jnp.allclose(out, ref, atol=1e-5, rtol=1e-5)

    # Multi-block grid + masked tail (N not a multiple of block_rows).
    N2 = 600
    kx2, kt2 = jax.random.split(jax.random.PRNGKey(1))
    x_big = jax.random.normal(kx2, (N2, n_hid), dtype=jnp.float32)
    t_big = jax.random.randint(kt2, (N2,), 0, max_len, dtype=jnp.int32)
    out_big = jax.block_until_ready(
        rel_temporal_encoding(x_big, t_big, emb_table, W, b, block_rows=256))
    ref_big = x_big + emb_table[t_big] @ W.T + b
    assert jnp.allclose(out_big, ref_big, atol=1e-5, rtol=1e-5)

    # bf16 streams (halves HBM bytes on v6e/v7x; f32 accumulate/adds in-kernel).
    out_bf16 = jax.block_until_ready(
        rel_temporal_encoding(x.astype(jnp.bfloat16), t,
                              emb_table.astype(jnp.bfloat16),
                              W.astype(jnp.bfloat16), b.astype(jnp.bfloat16)))
    assert out_bf16.dtype == jnp.bfloat16
    assert jnp.allclose(out_bf16.astype(jnp.float32), ref, atol=1e-1, rtol=5e-2)

    # TODO(synk): the module's dropout=0.2 ctor arg is never used in forward(),
    # so no dropout is implemented here.
    print("KERNEL_OK")
</pallas_src>

<mosaic_0001>
module attributes {stable_mosaic.version = 11 : i64} {
  func.func @rte_kernel(%arg0: i32, %arg1: memref<8x1xi32, #tpu.memory_space<vmem>>, %arg2: memref<8x32xf32, #tpu.memory_space<vmem>>, %arg3: memref<256x32xf32, #tpu.memory_space<vmem>>, %arg4: memref<8x32xf32, #tpu.memory_space<vmem>>) attributes {dimension_semantics = [#tpu.dimension_semantics<parallel>], iteration_bounds = array<i64: 1>, scalar_prefetch = 0 : i64, scratch_operands = 0 : i64, tpu.core_type = #tpu.core_type<tc>, window_params = [{transform_indices = @transform_0, window_bounds = array<i64: 8, 1>}, {transform_indices = @transform_1, window_bounds = array<i64: 8, 32>}, {pipeline_mode = #tpu.pipeline_mode<synchronous>, transform_indices = @transform_2, window_bounds = array<i64: 256, 32>}, {transform_indices = @transform_3, window_bounds = array<i64: 8, 32>}]} {
    %c0 = arith.constant 0 : index
    %c0_0 = arith.constant 0 : index
    %0 = vector.load %arg1[%c0, %c0_0] : memref<8x1xi32, #tpu.memory_space<vmem>>, vector<8x1xi32>
    %1 = tpu.iota {dimensions = array<i32: 1>} : vector<8x256xi32>
    %2 = vector.broadcast %0 : vector<8x1xi32> to vector<8x256xi32>
    %3 = arith.cmpi eq, %1, %2 : vector<8x256xi32>
    %4 = arith.extui %3 : vector<8x256xi1> to vector<8x256xi32>
    %5 = arith.sitofp %4 : vector<8x256xi32> to vector<8x256xf32>
    %c0_1 = arith.constant 0 : index
    %c0_2 = arith.constant 0 : index
    %6 = vector.load %arg3[%c0_1, %c0_2] : memref<256x32xf32, #tpu.memory_space<vmem>>, vector<256x32xf32>
    %cst = arith.constant dense<0.000000e+00> : vector<8x32xf32>
    %7 = tpu.matmul %5, %6, %cst {dimension_numbers = #tpu.dot_dimension_numbers<[1], [0], [0], [1], [0, 0, 1, 1], [], []>} : vector<8x256xf32>, vector<256x32xf32>, vector<8x32xf32> -> vector<8x32xf32>
    %c0_3 = arith.constant 0 : index
    %c0_4 = arith.constant 0 : index
    %8 = vector.load %arg2[%c0_3, %c0_4] : memref<8x32xf32, #tpu.memory_space<vmem>>, vector<8x32xf32>
    %9 = arith.addf %8, %7 : vector<8x32xf32>
    %c0_5 = arith.constant 0 : index
    %c0_6 = arith.constant 0 : index
    %10 = vector.load %arg4[%c0_5, %c0_6] : memref<8x32xf32, #tpu.memory_space<vmem>>, vector<8x32xf32>
    tpu.vector_store %arg4[%c0_5, %c0_6], %9 {strides = array<i32>} : memref<8x32xf32, #tpu.memory_space<vmem>>, vector<8x32xf32>,
    return
  }
  func.func @transform_0(%arg0: i32) -> (i32, i32) {
    %c0_i32 = arith.constant 0 : i32
    %c0_i32_0 = arith.constant 0 : i32
    return %arg0, %c0_i32 : i32, i32
  }
  func.func @transform_1(%arg0: i32) -> (i32, i32) {
    %c0_i32 = arith.constant 0 : i32
    %c0_i32_0 = arith.constant 0 : i32
    return %arg0, %c0_i32 : i32, i32
  }
  func.func @transform_2(%arg0: i32) -> (i32, i32) {
    %c0_i32 = arith.constant 0 : i32
    %c0_i32_0 = arith.constant 0 : i32
    %c0_i32_1 = arith.constant 0 : i32
    return %c0_i32, %c0_i32_0 : i32, i32
  }
  func.func @transform_3(%arg0: i32) -> (i32, i32) {
    %c0_i32 = arith.constant 0 : i32
    %c0_i32_0 = arith.constant 0 : i32
    return %arg0, %c0_i32 : i32, i32
  }
}

</mosaic_0001>

<llo_original>
// kernel: tpu_custom_call.1
$region0: #{tpu_custom_call.1}
  #allocation0 [shape = 'u32[]', space=smem, size = 0x4, offset = 0x4, fixed_abs, tag = 'smem constant byte address 0x4 - core index']
  #allocation1 [shape = 'u32[72,128]{1,0:T(1,128)}', space=vmem, size = 0x9000, scoped, tag = 'internal scratch']
  %s0 = inlined_call_operand.vmem [shape: s32[8,1], index: 0, kind: input, shape index: {}]
  %s1 = inlined_call_operand.vmem [shape: f32[8,32], index: 1, kind: input, shape index: {}]
  %s2 = inlined_call_operand.vmem [shape: f32[256,32], index: 2, kind: input, shape index: {}]
  %s3 = inlined_call_operand.hbm [shape: f32[8,32], index: 3, kind: output, shape index: {}]
  %s4 = sld [smem:[#allocation0]]
  $region22: #{tpu_custom_call.1} parent=0
    _
  %s6 = ssub.s32 1, %s4
  %s7 = scalar_select 0, %s6, %s4
  $region1: #{tpu_custom_call.1} parent=0
    #allocation2 [shape = 'u8[4096]{0}', space=vmem, size = 0x1000, scoped, tag = 'output window, operand 0, single buffered']
    #allocation3 [shape = 's32[1]{0}', space=sflag, size = 0x4, scoped, tag = 'scoped memory for tpu_custom_call.1']
    %8 = vsyncpa [#allocation3], 0
    // Predicated region
    $region2: #{tpu_custom_call.1} parent=1 // pred_check
      _
    $region3: #{tpu_custom_call.1} parent=1 // pred_check_branch
      %10 = sbr.rel (0) target = $region5
    $region4: #{tpu_custom_call.1} parent=1 // pred_region
      _
    $region5: #{tpu_custom_call.1} parent=1 // pred_fallthru
      _
    // Predicated region
    $region6: #{tpu_custom_call.1} parent=1 // pred_check
      _
    $region7: #{tpu_custom_call.1} parent=1 // pred_check_branch
      %12 = sbr.rel (0) target = $region9
    $region8: #{tpu_custom_call.1} parent=1 // pred_region
      _
    $region9: #{tpu_custom_call.1} parent=1 // pred_fallthru
      _
    // Predicated region
    $region10: #{tpu_custom_call.1} parent=1 // pred_check
      _
    $region11: #{tpu_custom_call.1} parent=1 // pred_check_branch
      %14 = sbr.rel (0) target = $region13
    $region12: #{tpu_custom_call.1} parent=1 // pred_region
      _
    $region13: #{tpu_custom_call.1} parent=1 // pred_fallthru
      _
    %v15 = vld [vmem:[%s0] sm:$0xff]
    %v16 = vlaneseq
    %v17 = vand.u32 %v16, 127
    %v18 = vadd.s32 %v17, 128
    %19 = vset.pattern.permute.xlu0 0
    %20 = vperm.xlu0 %19, %v15
    %v21 = vpop.permute.xlu0 %20
    %vm22 = vcmp.eq.s32.totalorder %v17, %v21
    %vm23 = vcmp.eq.s32.totalorder %v18, %v21
    %v24 = vsel %vm22, 1, 0
    %v25 = vsel %vm23, 1, 0
    %v26 = vcvt.s32.f32 %v24
    %v27 = vcvt.s32.f32 %v25
    %v28 = vld [vmem:[%s2] sm:$0xff]
    %v29 = vld [vmem:[%s2 + $0x8] sm:$0xff]
    %v30 = vld [vmem:[%s2 + $0x10] sm:$0xff]
    %v31 = vld [vmem:[%s2 + $0x18] sm:$0xff]
    %v32 = vld [vmem:[%s2 + $0x20] sm:$0xff]
    %v33 = vld [vmem:[%s2 + $0x28] sm:$0xff]
    %v34 = vld [vmem:[%s2 + $0x30] sm:$0xff]
    %v35 = vld [vmem:[%s2 + $0x38] sm:$0xff]
    %v36 = vld [vmem:[%s2 + $0x40] sm:$0xff]
    %v37 = vld [vmem:[%s2 + $0x48] sm:$0xff]
    %v38 = vld [vmem:[%s2 + $0x50] sm:$0xff]
    %v39 = vld [vmem:[%s2 + $0x58] sm:$0xff]
    %v40 = vld [vmem:[%s2 + $0x60] sm:$0xff]
    %v41 = vld [vmem:[%s2 + $0x68] sm:$0xff]
    %v42 = vld [vmem:[%s2 + $0x70] sm:$0xff]
    %v43 = vld [vmem:[%s2 + $0x78] sm:$0xff]
    %v44 = vld [vmem:[%s2 + $0x80] sm:$0xff]
    %v45 = vld [vmem:[%s2 + $0x88] sm:$0xff]
    %v46 = vld [vmem:[%s2 + $0x90] sm:$0xff]
    %v47 = vld [vmem:[%s2 + $0x98] sm:$0xff]
    %v48 = vld [vmem:[%s2 + $0xa0] sm:$0xff]
    %v49 = vld [vmem:[%s2 + $0xa8] sm:$0xff]
    %v50 = vld [vmem:[%s2 + $0xb0] sm:$0xff]
    %v51 = vld [vmem:[%s2 + $0xb8] sm:$0xff]
    %v52 = vld [vmem:[%s2 + $0xc0] sm:$0xff]
    %v53 = vld [vmem:[%s2 + $0xc8] sm:$0xff]
    %v54 = vld [vmem:[%s2 + $0xd0] sm:$0xff]
    %v55 = vld [vmem:[%s2 + $0xd8] sm:$0xff]
    %v56 = vld [vmem:[%s2 + $0xe0] sm:$0xff]
    %v57 = vld [vmem:[%s2 + $0xe8] sm:$0xff]
    %v58 = vld [vmem:[%s2 + $0xf0] sm:$0xff]
    %v59 = vld [vmem:[%s2 + $0xf8] sm:$0xff]
    %60 = vmatpush.msra.mxu0 %v43
    %61 = vmatpush.msra.mxu0 %v42
    %62 = vmatpush.msra.mxu0 %v41
    %63 = vmatpush.msra.mxu0 %v40
    %64 = vmatpush.msra.mxu0 %v39
    %65 = vmatpush.msra.mxu0 %v38
    %66 = vmatpush.msra.mxu0 %v37
    %67 = vmatpush.msra.mxu0 %v36
    %68 = vmatpush.msra.mxu0 %v35
    %69 = vmatpush.msra.mxu0 %v34
    %70 = vmatpush.msra.mxu0 %v33
    %71 = vmatpush.msra.mxu0 %v32
    %72 = vmatpush.msra.mxu0 %v31
    %73 = vmatpush.msra.mxu0 %v30
    %74 = vmatpush.msra.mxu0 %v29
    %75 = vmatpush.msra.mxu0 %v28
    %76 = vmatmul.f32.gmra.mxu0 %v26
    %v77 = vpop.f32.mrf.mxu0
    %v78 = vadd.f32 0.0, %v77
    %79 = vdwg.mxu0
    %80 = vmatpush.msra.mxu0 %v59
    %81 = vmatpush.msra.mxu0 %v58
    %82 = vmatpush.msra.mxu0 %v57
    %83 = vmatpush.msra.mxu0 %v56
    %84 = vmatpush.msra.mxu0 %v55
    %85 = vmatpush.msra.mxu0 %v54
    %86 = vmatpush.msra.mxu0 %v53
    %87 = vmatpush.msra.mxu0 %v52
    %88 = vmatpush.msra.mxu0 %v51
    %89 = vmatpush.msra.mxu0 %v50
    %90 = vmatpush.msra.mxu0 %v49
    %91 = vmatpush.msra.mxu0 %v48
    %92 = vmatpush.msra.mxu0 %v47
    %93 = vmatpush.msra.mxu0 %v46
    %94 = vmatpush.msra.mxu0 %v45
    %95 = vmatpush.msra.mxu0 %v44
    %96 = vmatmul.f32.gmra.mxu0 %v27
    %v97 = vpop.f32.mrf.mxu0
    %v98 = vadd.f32 %v78, %v97
    %99 = vdwg.mxu0
    %v100 = vld [vmem:[%s1] sm:$0xff]
    %v101 = vadd.f32 %v100, %v98
    %vm102 = vcmask 261120
    %103 = vst.msk [vmem:[#allocation2] sm:$0xff] %vm102, %v101
    // Predicated region
    $region14: #{tpu_custom_call.1} parent=1 // pred_check
      _
    $region15: #{tpu_custom_call.1} parent=1 // pred_check_branch
      %105 = sbr.rel (0) target = $region17
    $region16: #{tpu_custom_call.1} parent=1 // pred_region
      %107 = vsyncadd [#allocation3], 0
      %s109 = sshll.u32 [#allocation2], 4
      %s110 = int_to_ptr.vmem [resolvable:$true] %s109
      %s111 = sshll.u32 %s3, 4
      %s112 = int_to_ptr.hbm [resolvable:$true] %s111
      %114 = dma.vmem_to_hbm [thread:$0]  %s110, 128, %s112, [#allocation3]
    $region17: #{tpu_custom_call.1} parent=1 // pred_fallthru
      _
    // Predicated region
    $region18: #{tpu_custom_call.1} parent=1 // pred_check
      _
    $region19: #{tpu_custom_call.1} parent=1 // pred_check_branch
      %116 = sbr.rel (0) target = $region21
    $region20: #{tpu_custom_call.1} parent=1 // pred_region
      %118 = dma.done [#allocation3], 128
    $region21: #{tpu_custom_call.1} parent=1 // pred_fallthru
      _
    %119 = vsyncpa [#allocation3], 1

</llo_original>
